<compile_context>
chip_gen: v5e
topology: v5e:2x2
jax: 0.10.0
libtpu: 0.0.40
codegen_flags: <defaults>
</compile_context>

<pallas_src>
import jax
import jax.numpy as jnp
from jax import lax
from jax.experimental import pallas as pl
from jax.experimental.pallas import tpu as pltpu


def _round_up(x, m):
    return ((x + m - 1) // m) * m


# ---------------------------------------------------------------------------
# Pallas kernel: per-mode complex channel mixing  'bix,iox->box'
# ---------------------------------------------------------------------------
def _spectral_mix_kernel(ar_ref, ai_ref, w_ref, o_ref):
    """Complex channel mix for a block of Fourier modes.

    ar_ref : (MB, Bp, Ci)    Re(x_ft) for MB modes
    ai_ref : (MB, Bp, Ci)    Im(x_ft)
    w_ref  : (MB, 2Ci, Co)   per-mode weights, [wr ; wi] stacked along K
                             (un-duplicated -> intrinsic complex byte count)
    o_ref  : (MB, 2Bp, Co)   rows [0:Bp] = Re(out), rows [Bp:2Bp] = Im(out)
    """
    _mb, bp, ci = ar_ref.shape
    dt = w_ref.dtype                              # compute dtype (f32 or bf16)
    ar = ar_ref[...].astype(dt)
    ai = ai_ref[...].astype(dt)
    wr = w_ref[:, 0:ci, :]                        # (MB, Ci, Co)
    wi = w_ref[:, ci:2 * ci, :]                   # (MB, Ci, Co)

    dims = (((2,), (1,)), ((0,), (0,)))           # batch over modes, contract Ci

    def bdot(a, w):
        return lax.dot_general(a, w, dimension_numbers=dims,
                               preferred_element_type=jnp.float32)

    # (ar + i*ai) @ (wr + i*wi); MXU has huge slack here (memory-bound kernel),
    # so four small dots per block cost nothing extra vs. a fused one.
    o_ref[:, 0:bp, :] = bdot(ar, wr) - bdot(ai, wi)        # real part
    o_ref[:, bp:2 * bp, :] = bdot(ar, wi) + bdot(ai, wr)   # imag part


def spectral_mix_pallas(ar, ai, w_packed, *, mode_blk, vmem_limit_bytes):
    """Batched complex mixing over all (padded) retained modes.

    ar, ai   : (Mp, Bp, Ci) float32
    w_packed : (Mp, 2Ci, Co) float32 or bfloat16
    returns  : (Mp, 2Bp, Co) float32, rows [0:Bp]=Re, [Bp:2Bp]=Im
    """
    Mp, Bp, Ci = ar.shape
    Mw, K2, Co = w_packed.shape
    assert Mw == Mp and K2 == 2 * Ci and Mp % mode_blk == 0

    # Block shapes equal the full array extents in the last two dims, so the
    # (8,128) divisibility rule is satisfied without any lane padding.
    a_spec = pl.BlockSpec((mode_blk, Bp, Ci), lambda m: (m, 0, 0))
    w_spec = pl.BlockSpec((mode_blk, K2, Co), lambda m: (m, 0, 0))
    o_spec = pl.BlockSpec((mode_blk, 2 * Bp, Co), lambda m: (m, 0, 0))

    flops = 8 * Mp * Bp * Ci * Co                 # complex MAC count
    bytes_accessed = int(ar.size * ar.dtype.itemsize
                         + ai.size * ai.dtype.itemsize
                         + w_packed.size * w_packed.dtype.itemsize
                         + Mp * 2 * Bp * Co * 4)

    return pl.pallas_call(
        _spectral_mix_kernel,
        out_shape=jax.ShapeDtypeStruct((Mp, 2 * Bp, Co), jnp.float32),
        grid=(Mp // mode_blk,),
        in_specs=[a_spec, a_spec, w_spec],
        out_specs=o_spec,
        compiler_params=pltpu.CompilerParams(
            dimension_semantics=("parallel",),
            vmem_limit_bytes=vmem_limit_bytes),
        cost_estimate=pl.CostEstimate(
            flops=flops, transcendentals=0, bytes_accessed=bytes_accessed),
    )(ar, ai, w_packed)


# ---------------------------------------------------------------------------
# One-time weight packing (at init)
# ---------------------------------------------------------------------------
def pack_spectral_weights(weights, *, mode_align=8, dtype=jnp.float32):
    """Pack complex weights ONCE at init (mode-major, [wr ; wi], mode-padded).

    weights : (Ci, Co, modes1) complex64
    returns : (Mp, 2Ci, Co) `dtype`, Mp = roundup(modes1, mode_align).
              No duplication and no 128-lane padding -> intrinsic byte count
              (halved again with dtype=bfloat16).
    """
    Ci, Co, M = weights.shape
    w = jnp.transpose(weights, (2, 0, 1))                       # (M, Ci, Co)
    wr = jnp.real(w).astype(jnp.float32)
    wi = jnp.imag(w).astype(jnp.float32)
    packed = jnp.concatenate([wr, wi], axis=-2)                 # (M, 2Ci, Co)
    Mp = _round_up(M, mode_align)
    packed = jnp.pad(packed, ((0, Mp - M), (0, 0), (0, 0)))     # pad once here
    return packed.astype(dtype)


def _choose_mode_block(Mp, Bp, Ci, Co, w_itemsize, vmem_budget_bytes):
    """Largest divisor of Mp whose double-buffered working set fits the VMEM
    budget, preferring >= 2 grid steps so v7x's two TensorCores both get work.
    """
    per_mode = (2 * Bp * Ci * 4                 # ar + ai  (f32)
                + 2 * Ci * Co * w_itemsize      # weights
                + 2 * Bp * Co * 4)              # output   (f32)
    budget = (vmem_budget_bytes * 3) // 4       # headroom for the compiler
    divs = [d for d in range(1, Mp + 1) if Mp % d == 0]
    fits = [d for d in divs if 2 * d * per_mode <= budget] or [1]
    two_step = [d for d in fits if Mp // d >= 2]
    return max(two_step) if two_step else max(fits)


# ---------------------------------------------------------------------------
# Forward pass
# ---------------------------------------------------------------------------
def spectral_conv1d(x, w_packed, modes1, out_channels,
                    *, vmem_budget_bytes=32 << 20):
    """Forward pass of SpectralConv1d.

    x         : (B, Ci, N) float32
    w_packed  : output of pack_spectral_weights  (Mp, 2Ci, Co)
    returns   : (B, Co, N) float32   (requires Ci == Co, as in the reference)
    """
    B, Ci, N = x.shape
    Co = out_channels
    Mp, K2, Co_w = w_packed.shape
    assert K2 == 2 * Ci and Co_w == Co, "packed weights / channel mismatch"
    assert Mp >= modes1, "packed weights / modes1 mismatch"
    assert Ci == Co, "reference module requires in_channels == out_channels"

    n_freq = N // 2 + 1

    # TODO(synk): rfft/irfft have no clean Pallas equivalent; kept in jnp.fft.
    # (Optional structural follow-up per review: replace with small DFT-basis
    #  matmuls when modes1 << N and fuse them into the Pallas pipeline.)
    x_ft = jnp.fft.rfft(x.astype(jnp.float32), axis=2)          # (B, Ci, n_freq)

    # Mode-major Re/Im activations; only sublane (x8) padding on batch, no
    # lane padding, no duplication/negation passes (those live in the kernel).
    a = jnp.transpose(x_ft[:, :, :modes1], (2, 0, 1))           # (M, B, Ci)
    Bp = _round_up(B, 8)
    pad = ((0, Mp - modes1), (0, Bp - B), (0, 0))
    ar = jnp.pad(jnp.real(a).astype(jnp.float32), pad)          # (Mp, Bp, Ci)
    ai = jnp.pad(jnp.imag(a).astype(jnp.float32), pad)

    mb = _choose_mode_block(Mp, Bp, Ci, Co,
                            jnp.dtype(w_packed.dtype).itemsize,
                            vmem_budget_bytes)

    o = spectral_mix_pallas(ar, ai, w_packed, mode_blk=mb,
                            vmem_limit_bytes=vmem_budget_bytes)  # (Mp, 2Bp, Co)

    o_r = jnp.transpose(o[:modes1, 0:B, :], (1, 2, 0))           # (B, Co, M)
    o_i = jnp.transpose(o[:modes1, Bp:Bp + B, :], (1, 2, 0))
    out_modes = lax.complex(o_r, o_i)                            # complex64

    # Zero-pad the remaining frequencies (no full-size zeros + scatter).
    out_ft = jnp.pad(out_modes, ((0, 0), (0, 0), (0, n_freq - modes1)))
    return jnp.fft.irfft(out_ft, n=N, axis=2).astype(jnp.float32)


# ---------------------------------------------------------------------------
# Pure-JAX reference mirroring the PyTorch module
# ---------------------------------------------------------------------------
def _reference(x, weights, modes1):
    B, Ci, N = x.shape
    x_ft = jnp.fft.rfft(x, axis=2)
    mixed = jnp.einsum('bix,iox->box', x_ft[:, :, :modes1], weights)
    out_ft = jnp.zeros((B, Ci, N // 2 + 1), dtype=jnp.complex64)
    out_ft = out_ft.at[:, :, :modes1].set(mixed)
    return jnp.fft.irfft(out_ft, n=N, axis=2)


if __name__ == "__main__":
    # Small, deterministic setup consistent with the module.
    B, C_in, C_out, N, modes1 = 2, 4, 4, 16, 5

    key = jax.random.PRNGKey(0)
    kx, kwr, kwi = jax.random.split(key, 3)

    x = jax.random.normal(kx, (B, C_in, N), dtype=jnp.float32)

    # weights1 = scale * rand(Ci, Co, modes1, cfloat); rand -> U[0,1) parts.
    scale = 1.0 / (C_in * C_out)
    w_real = scale * jax.random.uniform(kwr, (C_in, C_out, modes1), dtype=jnp.float32)
    w_imag = scale * jax.random.uniform(kwi, (C_in, C_out, modes1), dtype=jnp.float32)
    weights1 = (w_real + 1j * w_imag).astype(jnp.complex64)

    ref = jax.block_until_ready(_reference(x, weights1, modes1))

    # --- f32 packed weights: strict check against the reference ------------
    w_packed = pack_spectral_weights(weights1)                  # (Mp, 2Ci, Co)
    out = jax.block_until_ready(spectral_conv1d(x, w_packed, modes1, C_out))
    assert out.shape == (B, C_out, N)
    assert jnp.allclose(out, ref, atol=1e-5, rtol=1e-5), "f32 mismatch vs reference"

    # --- bf16 packed weights (halves the dominant HBM stream): loose check --
    w_packed_bf16 = pack_spectral_weights(weights1, dtype=jnp.bfloat16)
    out_bf16 = jax.block_until_ready(
        spectral_conv1d(x, w_packed_bf16, modes1, C_out))
    rel = jnp.linalg.norm(out_bf16 - ref) / jnp.linalg.norm(ref)
    assert rel < 5e-2, f"bf16 relative error too large: {rel}"

    print("KERNEL_OK")
</pallas_src>

<mosaic_0001>
module attributes {stable_mosaic.version = 11 : i64} {
  func.func @_spectral_mix_kernel(%arg0: i32, %arg1: memref<4x8x4xf32, #tpu.memory_space<vmem>>, %arg2: memref<4x8x4xf32, #tpu.memory_space<vmem>>, %arg3: memref<4x8x4xf32, #tpu.memory_space<vmem>>, %arg4: memref<4x16x4xf32, #tpu.memory_space<vmem>>) attributes {dimension_semantics = [#tpu.dimension_semantics<parallel>], iteration_bounds = array<i64: 2>, scalar_prefetch = 0 : i64, scratch_operands = 0 : i64, tpu.core_type = #tpu.core_type<tc>, window_params = [{transform_indices = @transform_0, window_bounds = array<i64: 4, 8, 4>}, {transform_indices = @transform_1, window_bounds = array<i64: 4, 8, 4>}, {transform_indices = @transform_2, window_bounds = array<i64: 4, 8, 4>}, {transform_indices = @transform_3, window_bounds = array<i64: 4, 16, 4>}]} {
    %c0 = arith.constant 0 : index
    %c0_0 = arith.constant 0 : index
    %c0_1 = arith.constant 0 : index
    %0 = vector.load %arg1[%c0, %c0_0, %c0_1] : memref<4x8x4xf32, #tpu.memory_space<vmem>>, vector<4x8x4xf32>
    %c0_2 = arith.constant 0 : index
    %c0_3 = arith.constant 0 : index
    %c0_4 = arith.constant 0 : index
    %1 = vector.load %arg2[%c0_2, %c0_3, %c0_4] : memref<4x8x4xf32, #tpu.memory_space<vmem>>, vector<4x8x4xf32>
    %c0_5 = arith.constant 0 : index
    %c0_6 = arith.constant 0 : index
    %c0_7 = arith.constant 0 : index
    %2 = vector.load %arg3[%c0_5, %c0_6, %c0_7] : memref<4x8x4xf32, #tpu.memory_space<vmem>>, vector<4x4x4xf32>
    %c0_8 = arith.constant 0 : index
    %c4 = arith.constant 4 : index
    %c0_9 = arith.constant 0 : index
    %3 = vector.load %arg3[%c0_8, %c4, %c0_9] : memref<4x8x4xf32, #tpu.memory_space<vmem>>, vector<4x4x4xf32>
    %cst = arith.constant dense<0.000000e+00> : vector<4x8x4xf32>
    %4 = tpu.matmul %0, %2, %cst {dimension_numbers = #tpu.dot_dimension_numbers<[2], [1], [1], [2], [0, 0, 0, 1, 1, 2], [0], [0]>} : vector<4x8x4xf32>, vector<4x4x4xf32>, vector<4x8x4xf32> -> vector<4x8x4xf32>
    %cst_10 = arith.constant dense<0.000000e+00> : vector<4x8x4xf32>
    %5 = tpu.matmul %1, %3, %cst_10 {dimension_numbers = #tpu.dot_dimension_numbers<[2], [1], [1], [2], [0, 0, 0, 1, 1, 2], [0], [0]>} : vector<4x8x4xf32>, vector<4x4x4xf32>, vector<4x8x4xf32> -> vector<4x8x4xf32>
    %6 = arith.subf %4, %5 : vector<4x8x4xf32>
    %c0_11 = arith.constant 0 : index
    %c0_12 = arith.constant 0 : index
    %c0_13 = arith.constant 0 : index
    %7 = vector.load %arg4[%c0_11, %c0_12, %c0_13] : memref<4x16x4xf32, #tpu.memory_space<vmem>>, vector<4x8x4xf32>
    tpu.vector_store %arg4[%c0_11, %c0_12, %c0_13], %6 {strides = array<i32>} : memref<4x16x4xf32, #tpu.memory_space<vmem>>, vector<4x8x4xf32>,
    %cst_14 = arith.constant dense<0.000000e+00> : vector<4x8x4xf32>
    %8 = tpu.matmul %0, %3, %cst_14 {dimension_numbers = #tpu.dot_dimension_numbers<[2], [1], [1], [2], [0, 0, 0, 1, 1, 2], [0], [0]>} : vector<4x8x4xf32>, vector<4x4x4xf32>, vector<4x8x4xf32> -> vector<4x8x4xf32>
    %cst_15 = arith.constant dense<0.000000e+00> : vector<4x8x4xf32>
    %9 = tpu.matmul %1, %2, %cst_15 {dimension_numbers = #tpu.dot_dimension_numbers<[2], [1], [1], [2], [0, 0, 0, 1, 1, 2], [0], [0]>} : vector<4x8x4xf32>, vector<4x4x4xf32>, vector<4x8x4xf32> -> vector<4x8x4xf32>
    %10 = arith.addf %8, %9 : vector<4x8x4xf32>
    %c0_16 = arith.constant 0 : index
    %c8 = arith.constant 8 : index
    %c0_17 = arith.constant 0 : index
    %11 = vector.load %arg4[%c0_16, %c8, %c0_17] : memref<4x16x4xf32, #tpu.memory_space<vmem>>, vector<4x8x4xf32>
    tpu.vector_store %arg4[%c0_16, %c8, %c0_17], %10 {strides = array<i32>} : memref<4x16x4xf32, #tpu.memory_space<vmem>>, vector<4x8x4xf32>,
    return
  }
  func.func @transform_0(%arg0: i32) -> (i32, i32, i32) {
    %c0_i32 = arith.constant 0 : i32
    %c0_i32_0 = arith.constant 0 : i32
    %c0_i32_1 = arith.constant 0 : i32
    return %arg0, %c0_i32, %c0_i32_0 : i32, i32, i32
  }
  func.func @transform_1(%arg0: i32) -> (i32, i32, i32) {
    %c0_i32 = arith.constant 0 : i32
    %c0_i32_0 = arith.constant 0 : i32
    %c0_i32_1 = arith.constant 0 : i32
    return %arg0, %c0_i32, %c0_i32_0 : i32, i32, i32
  }
  func.func @transform_2(%arg0: i32) -> (i32, i32, i32) {
    %c0_i32 = arith.constant 0 : i32
    %c0_i32_0 = arith.constant 0 : i32
    %c0_i32_1 = arith.constant 0 : i32
    return %arg0, %c0_i32, %c0_i32_0 : i32, i32, i32
  }
  func.func @transform_3(%arg0: i32) -> (i32, i32, i32) {
    %c0_i32 = arith.constant 0 : i32
    %c0_i32_0 = arith.constant 0 : i32
    %c0_i32_1 = arith.constant 0 : i32
    return %arg0, %c0_i32, %c0_i32_0 : i32, i32, i32
  }
}

</mosaic_0001>

<llo_original>
// kernel: tpu_custom_call.1
$region0: #{tpu_custom_call.1}
  #allocation0 [shape = 'u32[]', space=smem, size = 0x4, offset = 0x4, fixed_abs, tag = 'smem constant byte address 0x4 - core index']
  #allocation1 [shape = 'u32[72,128]{1,0:T(1,128)}', space=vmem, size = 0x9000, scoped, tag = 'internal scratch']
  %s0 = inlined_call_operand.vmem [shape: f32[8,8,4], index: 0, kind: input, shape index: {}]
  %s1 = inlined_call_operand.vmem [shape: f32[8,8,4], index: 1, kind: input, shape index: {}]
  %s2 = inlined_call_operand.vmem [shape: f32[8,8,4], index: 2, kind: input, shape index: {}]
  %s3 = inlined_call_operand.vmem [shape: f32[8,16,4], index: 3, kind: output, shape index: {}]
  %s4 = sld [smem:[#allocation0]]
  $region45: #{tpu_custom_call.1} parent=0
    _
  %s6 = ssub.s32 1, %s4
  %s7 = scalar_select 0, %s6, %s4
  loop: start=0, step=1, limit=4
  $region2: #{tpu_custom_call.1} parent=0 // loop_pre_header
    _
  $region3: #{tpu_custom_call.1} parent=0 // loop_header
    %s9 = sphi 0, %s13
    %p10 = scmp.ge.s32.totalorder %s9, 4
    %s19 = sphi 0, %s21
    %s22 = sphi 0, %s19
    %s23 = sphi 0, %s22
    %s39 = sphi 0, %s23
    %s45 = sphi 0, %s47
    %s48 = sphi 0, %s45
    %s49 = sphi 0, %s48
    %s65 = sphi 0, %s49
    %s71 = sphi 0, %s73
    %s74 = sphi 0, %s71
    %s75 = sphi 0, %s74
    %s91 = sphi 0, %s75
    %s97 = sphi 0, %s99
    %s100 = sphi 0, %s97
    %s101 = sphi 0, %s100
    %s117 = sphi 0, %s101
  $region4: #{tpu_custom_call.1} parent=0 // loop_header_branch
    %12 = sbr.rel (%p10) target = $region8
  $region5: #{tpu_custom_call.1} parent=0 // loop_body
    %s14 = ssub.s32 %s9, 1
    %s15 = ssub.s32 %s9, 2
    %s16 = sadd.s32 %s9, 1
    %s17 = ssub.s32 %s9, %s16
    %p18 = scmp.eq.s32.totalorder %s17, 0
    %s20 = sadd.s32 %s19, 1
    %s21 = scalar_select %p18, %s19, %s20
    %p24 = pneg %p18
    %p25 = scmp.eq.s32.totalorder %s9, 1
    %p26 = por %p24, %p25
    %p27 = scmp.ne.s32.totalorder %s19, %s22
    %p28 = scmp.eq.s32.totalorder %s9, 0
    %p29 = por %p27, %p28
    %p30 = scmp.ne.s32.totalorder %s19, %s22
    %p31 = scmp.eq.s32.totalorder %s14, 1
    %p32 = por %p30, %p31
    %p33 = scmp.ne.s32.totalorder %s22, %s23
    %p34 = scmp.eq.s32.totalorder %s14, 0
    %p35 = por %p33, %p34
    %p36 = scmp.ne.s32.totalorder %s22, %s23
    %p37 = scmp.eq.s32.totalorder %s15, 1
    %p38 = por %p36, %p37
    %p40 = scmp.ne.s32.totalorder %s23, %s39
    %p41 = scmp.eq.s32.totalorder %s15, 0
    %p42 = por %p40, %p41
    %s43 = ssub.s32 %s9, %s16
    %p44 = scmp.eq.s32.totalorder %s43, 0
    %s46 = sadd.s32 %s45, 1
    %s47 = scalar_select %p44, %s45, %s46
    %p50 = pneg %p44
    %p51 = scmp.eq.s32.totalorder %s9, 1
    %p52 = por %p50, %p51
    %p53 = scmp.ne.s32.totalorder %s45, %s48
    %p54 = scmp.eq.s32.totalorder %s9, 0
    %p55 = por %p53, %p54
    %p56 = scmp.ne.s32.totalorder %s45, %s48
    %p57 = scmp.eq.s32.totalorder %s14, 1
    %p58 = por %p56, %p57
    %p59 = scmp.ne.s32.totalorder %s48, %s49
    %p60 = scmp.eq.s32.totalorder %s14, 0
    %p61 = por %p59, %p60
    %p62 = scmp.ne.s32.totalorder %s48, %s49
    %p63 = scmp.eq.s32.totalorder %s15, 1
    %p64 = por %p62, %p63
    %p66 = scmp.ne.s32.totalorder %s49, %s65
    %p67 = scmp.eq.s32.totalorder %s15, 0
    %p68 = por %p66, %p67
    %s69 = ssub.s32 %s9, %s16
    %p70 = scmp.eq.s32.totalorder %s69, 0
    %s72 = sadd.s32 %s71, 1
    %s73 = scalar_select %p70, %s71, %s72
    %p76 = pneg %p70
    %p77 = scmp.eq.s32.totalorder %s9, 1
    %p78 = por %p76, %p77
    %p79 = scmp.ne.s32.totalorder %s71, %s74
    %p80 = scmp.eq.s32.totalorder %s9, 0
    %p81 = por %p79, %p80
    %p82 = scmp.ne.s32.totalorder %s71, %s74
    %p83 = scmp.eq.s32.totalorder %s14, 1
    %p84 = por %p82, %p83
    %p85 = scmp.ne.s32.totalorder %s74, %s75
    %p86 = scmp.eq.s32.totalorder %s14, 0
    %p87 = por %p85, %p86
    %p88 = scmp.ne.s32.totalorder %s74, %s75
    %p89 = scmp.eq.s32.totalorder %s15, 1
    %p90 = por %p88, %p89
    %p92 = scmp.ne.s32.totalorder %s75, %s91
    %p93 = scmp.eq.s32.totalorder %s15, 0
    %p94 = por %p92, %p93
    %s95 = ssub.s32 %s9, %s16
    %p96 = scmp.eq.s32.totalorder %s95, 0
    %s98 = sadd.s32 %s97, 1
    %s99 = scalar_select %p96, %s97, %s98
    %p102 = pneg %p96
    %p103 = scmp.eq.s32.totalorder %s9, 1
    %p104 = por %p102, %p103
    %p105 = scmp.ne.s32.totalorder %s97, %s100
    %p106 = scmp.eq.s32.totalorder %s9, 0
    %p107 = por %p105, %p106
    %p108 = scmp.ne.s32.totalorder %s97, %s100
    %p109 = scmp.eq.s32.totalorder %s14, 1
    %p110 = por %p108, %p109
    %p111 = scmp.ne.s32.totalorder %s100, %s101
    %p112 = scmp.eq.s32.totalorder %s14, 0
    %p113 = por %p111, %p112
    %p114 = scmp.ne.s32.totalorder %s100, %s101
    %p115 = scmp.eq.s32.totalorder %s15, 1
    %p116 = por %p114, %p115
    %p118 = scmp.ne.s32.totalorder %s101, %s117
    %p119 = scmp.eq.s32.totalorder %s15, 0
    %p120 = por %p118, %p119
    %p121 = scmp.le.s32.totalorder 1, %s9
    %p122 = scmp.lt.s32.totalorder %s9, 3
    %p123 = pnand %p121, %p122
    %p124 = pneg %p123
    // Predicated region
    $region9: #{tpu_custom_call.1} parent=5 // pred_check
      _
    $region10: #{tpu_custom_call.1} parent=5 // pred_check_branch
      %126 = sbr.rel (%p123) target = $region12
    $region11: #{tpu_custom_call.1} parent=5 // pred_region
      %s127 = ssub.s32 %s9, 1
    $region12: #{tpu_custom_call.1} parent=5 // pred_fallthru
      _
    %p128 = scmp.lt.s32.totalorder %s9, 2
    // Predicated region
    $region13: #{tpu_custom_call.1} parent=5 // pred_check
      %p129 = pneg %p128
    $region14: #{tpu_custom_call.1} parent=5 // pred_check_branch
      %131 = sbr.rel (%p129) target = $region16
    $region15: #{tpu_custom_call.1} parent=5 // pred_region
      // Predicated region
      $region17: #{tpu_custom_call.1} parent=15 // pred_check
        %p132 = pneg %p29
      $region18: #{tpu_custom_call.1} parent=15 // pred_check_branch
        %134 = sbr.rel (%p132) target = $region20
      $region19: #{tpu_custom_call.1} parent=15 // pred_region
        %s135 = smul.u32 4, %s9
        %p136 = scmp.lt.s32.totalorder %s135, 7
        %s137 = scalar_select %p136, %s135, 7
        %s138 = smul.addr %s137, 8
        %s139 = scalar_lea.vmem %s0, %s138
        %s140 = smul.u32 4, %s9
      $region20: #{tpu_custom_call.1} parent=15 // pred_fallthru
        _
      // Predicated region
      $region21: #{tpu_custom_call.1} parent=15 // pred_check
        %p141 = pneg %p55
      $region22: #{tpu_custom_call.1} parent=15 // pred_check_branch
        %143 = sbr.rel (%p141) target = $region24
      $region23: #{tpu_custom_call.1} parent=15 // pred_region
        %s144 = smul.u32 4, %s9
        %p145 = scmp.lt.s32.totalorder %s144, 7
        %s146 = scalar_select %p145, %s144, 7
        %s147 = smul.addr %s146, 8
        %s148 = scalar_lea.vmem %s1, %s147
        %s149 = smul.u32 4, %s9
      $region24: #{tpu_custom_call.1} parent=15 // pred_fallthru
        _
      // Predicated region
      $region25: #{tpu_custom_call.1} parent=15 // pred_check
        %p150 = pneg %p81
      $region26: #{tpu_custom_call.1} parent=15 // pred_check_branch
        %152 = sbr.rel (%p150) target = $region28
      $region27: #{tpu_custom_call.1} parent=15 // pred_region
        %s153 = smul.u32 4, %s9
        %p154 = scmp.lt.s32.totalorder %s153, 7
        %s155 = scalar_select %p154, %s153, 7
        %s156 = smul.addr %s155, 8
        %s157 = scalar_lea.vmem %s2, %s156
        %s158 = smul.u32 4, %s9
      $region28: #{tpu_custom_call.1} parent=15 // pred_fallthru
        _
    $region16: #{tpu_custom_call.1} parent=5 // pred_fallthru
      _
    %p159 = scmp.le.s32.totalorder 1, %s9
    %p160 = scmp.lt.s32.totalorder %s9, 3
    %p161 = pnand %p159, %p160
    %p162 = pneg %p161
    // Predicated region
    $region29: #{tpu_custom_call.1} parent=5 // pred_check
      _
    $region30: #{tpu_custom_call.1} parent=5 // pred_check_branch
      %164 = sbr.rel (%p161) target = $region32
    $region31: #{tpu_custom_call.1} parent=5 // pred_region
      %s165 = ssub.s32 %s9, 1
      %s166 = smul.u32 4, %s14
      %p167 = scmp.lt.s32.totalorder %s166, 7
      %s168 = scalar_select %p167, %s166, 7
      %s169 = smul.addr %s168, 8
      %s170 = scalar_lea.vmem %s0, %s169
      %p171 = pneg %p35
      %p172 = pneg %p32
      %s173 = smul.u32 4, %s14
      %p174 = scmp.lt.s32.totalorder %s173, 7
      %s175 = scalar_select %p174, %s173, 7
      %s176 = smul.addr %s175, 8
      %s177 = scalar_lea.vmem %s1, %s176
      %p178 = pneg %p61
      %p179 = pneg %p58
      %s180 = smul.u32 4, %s14
      %p181 = scmp.lt.s32.totalorder %s180, 7
      %s182 = scalar_select %p181, %s180, 7
      %s183 = smul.addr %s182, 8
      %s184 = scalar_lea.vmem %s2, %s183
      %p185 = pneg %p87
      %p186 = pneg %p84
      %p187 = pneg %p113
      %p188 = pneg %p110
      %s189 = smul.u32 4, %s14
      %p190 = scmp.lt.s32.totalorder %s189, 7
      %s191 = scalar_select %p190, %s189, 7
      %s192 = smul.addr %s191, 2
      %s193 = smul.addr %s192, 8
      %s194 = scalar_lea.vmem %s3, %s193
      %s195 = smul.u32 4, %s14
      %p196 = scmp.lt.s32.totalorder %s195, 7
      %s197 = scalar_select %p196, %s195, 7
      %s198 = smul.addr %s197, 8
      %s199 = scalar_lea.vmem %s0, %s198
      %s200 = smul.u32 4, %s14
      %s201 = smul.u32 4, %s14
      %p202 = scmp.lt.s32.totalorder %s201, 7
      %s203 = scalar_select %p202, %s201, 7
      %s204 = smul.addr %s203, 8
      %s205 = scalar_lea.vmem %s1, %s204
      %s206 = smul.u32 4, %s14
      %s207 = smul.u32 4, %s14
      %p208 = scmp.lt.s32.totalorder %s207, 7
      %s209 = scalar_select %p208, %s207, 7
      %s210 = smul.addr %s209, 8
      %s211 = scalar_lea.vmem %s2, %s210
      %s212 = smul.u32 4, %s14
      %s213 = smul.u32 4, %s14
      %p214 = scmp.lt.s32.totalorder %s213, 7
      %s215 = scalar_select %p214, %s213, 7
      %s216 = smul.addr %s215, 2
      %s217 = smul.addr %s216, 8
      %s218 = scalar_lea.vmem %s3, %s217
      %s219 = smul.u32 4, %s14
      %v220 = vld [vmem:[%s199] sm:$0xff]
      %v221 = vld [vmem:[%s199 + $0x8] sm:$0xff]
      %v222 = vld [vmem:[%s199 + $0x10] sm:$0xff]
      %v223 = vld [vmem:[%s199 + $0x18] sm:$0xff]
      %v224 = vld [vmem:[%s205] sm:$0xff]
      %v225 = vld [vmem:[%s205 + $0x8] sm:$0xff]
      %v226 = vld [vmem:[%s205 + $0x10] sm:$0xff]
      %v227 = vld [vmem:[%s205 + $0x18] sm:$0xff]
      %v228 = vld [vmem:[%s211] sm:$0xf]
      %v229 = vld [vmem:[%s211 + $0x8] sm:$0xf]
      %v230 = vld [vmem:[%s211 + $0x10] sm:$0xf]
      %v231 = vld [vmem:[%s211 + $0x18] sm:$0xf]
      %v232 = vld [vmem:[%s211 + $0x4] sm:$0xf]
      %v233 = vld [vmem:[%s211 + $0xc] sm:$0xf]
      %v234 = vld [vmem:[%s211 + $0x14] sm:$0xf]
      %v235 = vld [vmem:[%s211 + $0x1c] sm:$0xf]
      %vm236 = vcmask 31744
      %v238 = vsel %vm236, %v220, 0
      %vm240 = vcmask 1043456
      %v242 = vsel %vm240, %v228, 0
      %244 = vmatpush.msra.mxu0 0.0
      %245 = vmatpush.msra.mxu0 0.0
      %246 = vmatpush.msra.mxu0 0.0
      %247 = vmatpush.msra.mxu0 0.0
      %248 = vmatpush.msra.mxu0 0.0
      %249 = vmatpush.msra.mxu0 0.0
      %250 = vmatpush.msra.mxu0 0.0
      %251 = vmatpush.msra.mxu0 0.0
      %252 = vmatpush.msra.mxu0 0.0
      %253 = vmatpush.msra.mxu0 0.0
      %254 = vmatpush.msra.mxu0 0.0
      %255 = vmatpush.msra.mxu0 0.0
      %256 = vmatpush.msra.mxu0 0.0
      %257 = vmatpush.msra.mxu0 0.0
      %258 = vmatpush.msra.mxu0 0.0
      %259 = vmatpush.msra.mxu0 %v242
      %260 = vmatmul.f32.gmra.mxu0 %v238
      %v261 = vpop.f32.mrf.mxu0
      %v262 = vadd.f32 0.0, %v261
      %263 = vdwg.mxu0
      %v265 = vsel %vm236, %v221, 0
      %v268 = vsel %vm240, %v229, 0
      %270 = vmatpush.msra.mxu0 0.0
      %271 = vmatpush.msra.mxu0 0.0
      %272 = vmatpush.msra.mxu0 0.0
      %273 = vmatpush.msra.mxu0 0.0
      %274 = vmatpush.msra.mxu0 0.0
      %275 = vmatpush.msra.mxu0 0.0
      %276 = vmatpush.msra.mxu0 0.0
      %277 = vmatpush.msra.mxu0 0.0
      %278 = vmatpush.msra.mxu0 0.0
      %279 = vmatpush.msra.mxu0 0.0
      %280 = vmatpush.msra.mxu0 0.0
      %281 = vmatpush.msra.mxu0 0.0
      %282 = vmatpush.msra.mxu0 0.0
      %283 = vmatpush.msra.mxu0 0.0
      %284 = vmatpush.msra.mxu0 0.0
      %285 = vmatpush.msra.mxu0 %v268
      %286 = vmatmul.f32.gmra.mxu0 %v265
      %v287 = vpop.f32.mrf.mxu0
      %v288 = vadd.f32 0.0, %v287
      %289 = vdwg.mxu0
      %v291 = vsel %vm236, %v222, 0
      %v294 = vsel %vm240, %v230, 0
      %296 = vmatpush.msra.mxu0 0.0
      %297 = vmatpush.msra.mxu0 0.0
      %298 = vmatpush.msra.mxu0 0.0
      %299 = vmatpush.msra.mxu0 0.0
      %300 = vmatpush.msra.mxu0 0.0
      %301 = vmatpush.msra.mxu0 0.0
      %302 = vmatpush.msra.mxu0 0.0
      %303 = vmatpush.msra.mxu0 0.0
      %304 = vmatpush.msra.mxu0 0.0
      %305 = vmatpush.msra.mxu0 0.0
      %306 = vmatpush.msra.mxu0 0.0
      %307 = vmatpush.msra.mxu0 0.0
      %308 = vmatpush.msra.mxu0 0.0
      %309 = vmatpush.msra.mxu0 0.0
      %310 = vmatpush.msra.mxu0 0.0
      %311 = vmatpush.msra.mxu0 %v294
      %312 = vmatmul.f32.gmra.mxu0 %v291
      %v313 = vpop.f32.mrf.mxu0
      %v314 = vadd.f32 0.0, %v313
      %315 = vdwg.mxu0
      %v317 = vsel %vm236, %v223, 0
      %v320 = vsel %vm240, %v231, 0
      %322 = vmatpush.msra.mxu0 0.0
      %323 = vmatpush.msra.mxu0 0.0
      %324 = vmatpush.msra.mxu0 0.0
      %325 = vmatpush.msra.mxu0 0.0
      %326 = vmatpush.msra.mxu0 0.0
      %327 = vmatpush.msra.mxu0 0.0
      %328 = vmatpush.msra.mxu0 0.0
      %329 = vmatpush.msra.mxu0 0.0
      %330 = vmatpush.msra.mxu0 0.0
      %331 = vmatpush.msra.mxu0 0.0
      %332 = vmatpush.msra.mxu0 0.0
      %333 = vmatpush.msra.mxu0 0.0
      %334 = vmatpush.msra.mxu0 0.0
      %335 = vmatpush.msra.mxu0 0.0
      %336 = vmatpush.msra.mxu0 0.0
      %337 = vmatpush.msra.mxu0 %v320
      %338 = vmatmul.f32.gmra.mxu0 %v317
      %v339 = vpop.f32.mrf.mxu0
      %v340 = vadd.f32 0.0, %v339
      %341 = vdwg.mxu0
      %v343 = vsel %vm236, %v224, 0
      %v346 = vsel %vm240, %v232, 0
      %348 = vmatpush.msra.mxu0 0.0
      %349 = vmatpush.msra.mxu0 0.0
      %350 = vmatpush.msra.mxu0 0.0
      %351 = vmatpush.msra.mxu0 0.0
      %352 = vmatpush.msra.mxu0 0.0
      %353 = vmatpush.msra.mxu0 0.0
      %354 = vmatpush.msra.mxu0 0.0
      %355 = vmatpush.msra.mxu0 0.0
      %356 = vmatpush.msra.mxu0 0.0
      %357 = vmatpush.msra.mxu0 0.0
      %358 = vmatpush.msra.mxu0 0.0
      %359 = vmatpush.msra.mxu0 0.0
      %360 = vmatpush.msra.mxu0 0.0
      %361 = vmatpush.msra.mxu0 0.0
      %362 = vmatpush.msra.mxu0 0.0
      %363 = vmatpush.msra.mxu0 %v346
      %364 = vmatmul.f32.gmra.mxu0 %v343
      %v365 = vpop.f32.mrf.mxu0
      %v366 = vadd.f32 0.0, %v365
      %367 = vdwg.mxu0
      %v369 = vsel %vm236, %v225, 0
      %v372 = vsel %vm240, %v233, 0
      %374 = vmatpush.msra.mxu0 0.0
      %375 = vmatpush.msra.mxu0 0.0
      %376 = vmatpush.msra.mxu0 0.0
      %377 = vmatpush.msra.mxu0 0.0
      %378 = vmatpush.msra.mxu0 0.0
      %379 = vmatpush.msra.mxu0 0.0
      %380 = vmatpush.msra.mxu0 0.0
      %381 = vmatpush.msra.mxu0 0.0
      %382 = vmatpush.msra.mxu0 0.0
      %383 = vmatpush.msra.mxu0 0.0
      %384 = vmatpush.msra.mxu0 0.0
      %385 = vmatpush.msra.mxu0 0.0
      %386 = vmatpush.msra.mxu0 0.0
      %387 = vmatpush.msra.mxu0 0.0
      %388 = vmatpush.msra.mxu0 0.0
      %389 = vmatpush.msra.mxu0 %v372
      %390 = vmatmul.f32.gmra.mxu0 %v369
      %v391 = vpop.f32.mrf.mxu0
      %v392 = vadd.f32 0.0, %v391
      %393 = vdwg.mxu0
      %v395 = vsel %vm236, %v226, 0
      %v398 = vsel %vm240, %v234, 0
      %400 = vmatpush.msra.mxu0 0.0
      %401 = vmatpush.msra.mxu0 0.0
      %402 = vmatpush.msra.mxu0 0.0
      %403 = vmatpush.msra.mxu0 0.0
      %404 = vmatpush.msra.mxu0 0.0
      %405 = vmatpush.msra.mxu0 0.0
      %406 = vmatpush.msra.mxu0 0.0
      %407 = vmatpush.msra.mxu0 0.0
      %408 = vmatpush.msra.mxu0 0.0
      %409 = vmatpush.msra.mxu0 0.0
      %410 = vmatpush.msra.mxu0 0.0
      %411 = vmatpush.msra.mxu0 0.0
      %412 = vmatpush.msra.mxu0 0.0
      %413 = vmatpush.msra.mxu0 0.0
      %414 = vmatpush.msra.mxu0 0.0
      %415 = vmatpush.msra.mxu0 %v398
      %416 = vmatmul.f32.gmra.mxu0 %v395
      %v417 = vpop.f32.mrf.mxu0
      %v418 = vadd.f32 0.0, %v417
      %419 = vdwg.mxu0
      %v421 = vsel %vm236, %v227, 0
      %v424 = vsel %vm240, %v235, 0
      %426 = vmatpush.msra.mxu0 0.0
      %427 = vmatpush.msra.mxu0 0.0
      %428 = vmatpush.msra.mxu0 0.0
      %429 = vmatpush.msra.mxu0 0.0
      %430 = vmatpush.msra.mxu0 0.0
      %431 = vmatpush.msra.mxu0 0.0
      %432 = vmatpush.msra.mxu0 0.0
      %433 = vmatpush.msra.mxu0 0.0
      %434 = vmatpush.msra.mxu0 0.0
      %435 = vmatpush.msra.mxu0 0.0
      %436 = vmatpush.msra.mxu0 0.0
      %437 = vmatpush.msra.mxu0 0.0
      %438 = vmatpush.msra.mxu0 0.0
      %439 = vmatpush.msra.mxu0 0.0
      %440 = vmatpush.msra.mxu0 0.0
      %441 = vmatpush.msra.mxu0 %v424
      %442 = vmatmul.f32.gmra.mxu0 %v421
      %v443 = vpop.f32.mrf.mxu0
      %v444 = vadd.f32 0.0, %v443
      %445 = vdwg.mxu0
      %v446 = vsub.f32 %v262, %v366
      %v447 = vsub.f32 %v288, %v392
      %v448 = vsub.f32 %v314, %v418
      %v449 = vsub.f32 %v340, %v444
      %450 = vst.msk [vmem:[%s218] sm:$0xff] %vm236, %v446
      %451 = vst.msk [vmem:[%s218 + $0x10] sm:$0xff] %vm236, %v447
      %452 = vst.msk [vmem:[%s218 + $0x20] sm:$0xff] %vm236, %v448
      %453 = vst.msk [vmem:[%s218 + $0x30] sm:$0xff] %vm236, %v449
      %454 = vmatpush.msra.mxu0 0.0
      %455 = vmatpush.msra.mxu0 0.0
      %456 = vmatpush.msra.mxu0 0.0
      %457 = vmatpush.msra.mxu0 0.0
      %458 = vmatpush.msra.mxu0 0.0
      %459 = vmatpush.msra.mxu0 0.0
      %460 = vmatpush.msra.mxu0 0.0
      %461 = vmatpush.msra.mxu0 0.0
      %462 = vmatpush.msra.mxu0 0.0
      %463 = vmatpush.msra.mxu0 0.0
      %464 = vmatpush.msra.mxu0 0.0
      %465 = vmatpush.msra.mxu0 0.0
      %466 = vmatpush.msra.mxu0 0.0
      %467 = vmatpush.msra.mxu0 0.0
      %468 = vmatpush.msra.mxu0 0.0
      %469 = vmatpush.msra.mxu0 %v242
      %470 = vmatmul.f32.gmra.mxu0 %v343
      %v471 = vpop.f32.mrf.mxu0
      %v472 = vadd.f32 0.0, %v471
      %473 = vdwg.mxu0
      %474 = vmatpush.msra.mxu0 0.0
      %475 = vmatpush.msra.mxu0 0.0
      %476 = vmatpush.msra.mxu0 0.0
      %477 = vmatpush.msra.mxu0 0.0
      %478 = vmatpush.msra.mxu0 0.0
      %479 = vmatpush.msra.mxu0 0.0
      %480 = vmatpush.msra.mxu0 0.0
      %481 = vmatpush.msra.mxu0 0.0
      %482 = vmatpush.msra.mxu0 0.0
      %483 = vmatpush.msra.mxu0 0.0
      %484 = vmatpush.msra.mxu0 0.0
      %485 = vmatpush.msra.mxu0 0.0
      %486 = vmatpush.msra.mxu0 0.0
      %487 = vmatpush.msra.mxu0 0.0
      %488 = vmatpush.msra.mxu0 0.0
      %489 = vmatpush.msra.mxu0 %v268
      %490 = vmatmul.f32.gmra.mxu0 %v369
      %v491 = vpop.f32.mrf.mxu0
      %v492 = vadd.f32 0.0, %v491
      %493 = vdwg.mxu0
      %494 = vmatpush.msra.mxu0 0.0
      %495 = vmatpush.msra.mxu0 0.0
      %496 = vmatpush.msra.mxu0 0.0
      %497 = vmatpush.msra.mxu0 0.0
      %498 = vmatpush.msra.mxu0 0.0
      %499 = vmatpush.msra.mxu0 0.0
      %500 = vmatpush.msra.mxu0 0.0
      %501 = vmatpush.msra.mxu0 0.0
      %502 = vmatpush.msra.mxu0 0.0
      %503 = vmatpush.msra.mxu0 0.0
      %504 = vmatpush.msra.mxu0 0.0
      %505 = vmatpush.msra.mxu0 0.0
      %506 = vmatpush.msra.mxu0 0.0
      %507 = vmatpush.msra.mxu0 0.0
      %508 = vmatpush.msra.mxu0 0.0
      %509 = vmatpush.msra.mxu0 %v294
      %510 = vmatmul.f32.gmra.mxu0 %v395
      %v511 = vpop.f32.mrf.mxu0
      %v512 = vadd.f32 0.0, %v511
      %513 = vdwg.mxu0
      %514 = vmatpush.msra.mxu0 0.0
      %515 = vmatpush.msra.mxu0 0.0
      %516 = vmatpush.msra.mxu0 0.0
      %517 = vmatpush.msra.mxu0 0.0
      %518 = vmatpush.msra.mxu0 0.0
      %519 = vmatpush.msra.mxu0 0.0
      %520 = vmatpush.msra.mxu0 0.0
      %521 = vmatpush.msra.mxu0 0.0
      %522 = vmatpush.msra.mxu0 0.0
      %523 = vmatpush.msra.mxu0 0.0
      %524 = vmatpush.msra.mxu0 0.0
      %525 = vmatpush.msra.mxu0 0.0
      %526 = vmatpush.msra.mxu0 0.0
      %527 = vmatpush.msra.mxu0 0.0
      %528 = vmatpush.msra.mxu0 0.0
      %529 = vmatpush.msra.mxu0 %v320
      %530 = vmatmul.f32.gmra.mxu0 %v421
      %v531 = vpop.f32.mrf.mxu0
      %v532 = vadd.f32 0.0, %v531
      %533 = vdwg.mxu0
      %534 = vmatpush.msra.mxu0 0.0
      %535 = vmatpush.msra.mxu0 0.0
      %536 = vmatpush.msra.mxu0 0.0
      %537 = vmatpush.msra.mxu0 0.0
      %538 = vmatpush.msra.mxu0 0.0
      %539 = vmatpush.msra.mxu0 0.0
      %540 = vmatpush.msra.mxu0 0.0
      %541 = vmatpush.msra.mxu0 0.0
      %542 = vmatpush.msra.mxu0 0.0
      %543 = vmatpush.msra.mxu0 0.0
      %544 = vmatpush.msra.mxu0 0.0
      %545 = vmatpush.msra.mxu0 0.0
      %546 = vmatpush.msra.mxu0 0.0
      %547 = vmatpush.msra.mxu0 0.0
      %548 = vmatpush.msra.mxu0 0.0
      %549 = vmatpush.msra.mxu0 %v346
      %550 = vmatmul.f32.gmra.mxu0 %v238
      %v551 = vpop.f32.mrf.mxu0
      %v552 = vadd.f32 %v472, %v551
      %553 = vdwg.mxu0
      %554 = vmatpush.msra.mxu0 0.0
      %555 = vmatpush.msra.mxu0 0.0
      %556 = vmatpush.msra.mxu0 0.0
      %557 = vmatpush.msra.mxu0 0.0
      %558 = vmatpush.msra.mxu0 0.0
      %559 = vmatpush.msra.mxu0 0.0
      %560 = vmatpush.msra.mxu0 0.0
      %561 = vmatpush.msra.mxu0 0.0
      %562 = vmatpush.msra.mxu0 0.0
      %563 = vmatpush.msra.mxu0 0.0
      %564 = vmatpush.msra.mxu0 0.0
      %565 = vmatpush.msra.mxu0 0.0
      %566 = vmatpush.msra.mxu0 0.0
      %567 = vmatpush.msra.mxu0 0.0
      %568 = vmatpush.msra.mxu0 0.0
      %569 = vmatpush.msra.mxu0 %v372
      %570 = vmatmul.f32.gmra.mxu0 %v265
      %v571 = vpop.f32.mrf.mxu0
      %v572 = vadd.f32 %v492, %v571
      %573 = vdwg.mxu0
      %574 = vmatpush.msra.mxu0 0.0
      %575 = vmatpush.msra.mxu0 0.0
      %576 = vmatpush.msra.mxu0 0.0
      %577 = vmatpush.msra.mxu0 0.0
      %578 = vmatpush.msra.mxu0 0.0
      %579 = vmatpush.msra.mxu0 0.0
      %580 = vmatpush.msra.mxu0 0.0
      %581 = vmatpush.msra.mxu0 0.0
      %582 = vmatpush.msra.mxu0 0.0
      %583 = vmatpush.msra.mxu0 0.0
      %584 = vmatpush.msra.mxu0 0.0
      %585 = vmatpush.msra.mxu0 0.0
      %586 = vmatpush.msra.mxu0 0.0
      %587 = vmatpush.msra.mxu0 0.0
      %588 = vmatpush.msra.mxu0 0.0
      %589 = vmatpush.msra.mxu0 %v398
      %590 = vmatmul.f32.gmra.mxu0 %v291
      %v591 = vpop.f32.mrf.mxu0
      %v592 = vadd.f32 %v512, %v591
      %593 = vdwg.mxu0
      %594 = vmatpush.msra.mxu0 0.0
      %595 = vmatpush.msra.mxu0 0.0
      %596 = vmatpush.msra.mxu0 0.0
      %597 = vmatpush.msra.mxu0 0.0
      %598 = vmatpush.msra.mxu0 0.0
      %599 = vmatpush.msra.mxu0 0.0
      %600 = vmatpush.msra.mxu0 0.0
      %601 = vmatpush.msra.mxu0 0.0
      %602 = vmatpush.msra.mxu0 0.0
      %603 = vmatpush.msra.mxu0 0.0
      %604 = vmatpush.msra.mxu0 0.0
      %605 = vmatpush.msra.mxu0 0.0
      %606 = vmatpush.msra.mxu0 0.0
      %607 = vmatpush.msra.mxu0 0.0
      %608 = vmatpush.msra.mxu0 0.0
      %609 = vmatpush.msra.mxu0 %v424
      %610 = vmatmul.f32.gmra.mxu0 %v317
      %v611 = vpop.f32.mrf.mxu0
      %v612 = vadd.f32 %v532, %v611
      %613 = vdwg.mxu0
      %614 = vst.msk [vmem:[%s218 + $0x8] sm:$0xff] %vm236, %v552
      %615 = vst.msk [vmem:[%s218 + $0x18] sm:$0xff] %vm236, %v572
      %616 = vst.msk [vmem:[%s218 + $0x28] sm:$0xff] %vm236, %v592
      %617 = vst.msk [vmem:[%s218 + $0x38] sm:$0xff] %vm236, %v612
      %s618 = smul.u32 4, %s14
      %p619 = scmp.lt.s32.totalorder %s618, 7
      %s620 = scalar_select %p619, %s618, 7
      %s621 = smul.addr %s620, 2
      %s622 = smul.addr %s621, 8
      %s623 = scalar_lea.vmem %s3, %s622
      // Predicated region
      $region33: #{tpu_custom_call.1} parent=31 // pred_check
        %p624 = pneg %p110
      $region34: #{tpu_custom_call.1} parent=31 // pred_check_branch
        %626 = sbr.rel (%p624) target = $region36
      $region35: #{tpu_custom_call.1} parent=31 // pred_region
        %s627 = smul.u32 4, %s14
      $region36: #{tpu_custom_call.1} parent=31 // pred_fallthru
        _
    $region32: #{tpu_custom_call.1} parent=5 // pred_fallthru
      _
    %p628 = scmp.le.s32.totalorder 2, %s9
    // Predicated region
    $region37: #{tpu_custom_call.1} parent=5 // pred_check
      %p629 = pneg %p628
    $region38: #{tpu_custom_call.1} parent=5 // pred_check_branch
      %631 = sbr.rel (%p629) target = $region40
    $region39: #{tpu_custom_call.1} parent=5 // pred_region
      %s632 = ssub.s32 %s9, 2
      // Predicated region
      $region41: #{tpu_custom_call.1} parent=39 // pred_check
        %p633 = pneg %p116
      $region42: #{tpu_custom_call.1} parent=39 // pred_check_branch
        %635 = sbr.rel (%p633) target = $region44
      $region43: #{tpu_custom_call.1} parent=39 // pred_region
        %s636 = smul.u32 4, %s15
        %p637 = scmp.lt.s32.totalorder %s636, 7
        %s638 = scalar_select %p637, %s636, 7
        %s639 = smul.addr %s638, 2
        %s640 = smul.addr %s639, 8
        %s641 = scalar_lea.vmem %s3, %s640
      $region44: #{tpu_custom_call.1} parent=39 // pred_fallthru
        _
    $region40: #{tpu_custom_call.1} parent=5 // pred_fallthru
      _
  $region6: #{tpu_custom_call.1} parent=0 // loop_footer
    %s13 = sadd.s32 1, %s9
  $region7: #{tpu_custom_call.1} parent=0 // loop_footer_branch
    %8 = sbr.rel target = $region3
  $region8: #{tpu_custom_call.1} parent=0 // loop_exit
    _

</llo_original>
